<compile_context>
chip_gen: v7x
topology: tpu7x:2x2x1
jax: 0.10.0
libtpu: 0.0.40
codegen_flags: <defaults>
</compile_context>

<pallas_src>
import functools

import jax
import jax.numpy as jnp
from jax import lax
from jax.experimental import pallas as pl
from jax.experimental.pallas import tpu as pltpu

_LN_EPS = 1e-5
_NEG_BIG = -1e30


def _round_up(x, m):
    return (x + m - 1) // m * m


def _pick_tile(dim, target, align):
    """Largest tile <= target that divides dim and is align-aligned, else the full dim.

    Only used for dims we control (M=B*S, d_model, 3*d_model, d_ff, S); the vocab
    axis is padded explicitly in the wrappers so it never hits this fallback.
    """
    if dim <= target:
        return dim
    t = (target // align) * align
    while t >= align:
        if dim % t == 0:
            return t
        t -= align
    return dim


def _hw_config():
    """Per-generation tile targets and VMEM limit (v5e/v6e: 128 MiB, v7x: 64 MiB)."""
    vmem_bytes = 64 * 1024 * 1024
    try:
        vmem_bytes = int(getattr(pltpu.get_tpu_info(), "vmem_capacity_bytes", vmem_bytes))
    except Exception:
        pass
    if vmem_bytes >= 96 * 1024 * 1024:                       # v5e / v6e
        return dict(tm=256, tn=1024, tk=1024, tf=1024, tv=4096,
                    vmem_limit=80 * 1024 * 1024)
    return dict(tm=256, tn=512, tk=512, tf=512, tv=2048,     # v7x
                vmem_limit=40 * 1024 * 1024)


_CFG = _hw_config()


def _layernorm_f32(x_ref, g_ref, b_ref, eps):
    x = x_ref[...].astype(jnp.float32)
    mu = jnp.mean(x, axis=-1, keepdims=True)
    var = jnp.mean(jnp.square(x - mu), axis=-1, keepdims=True)
    return (x - mu) * lax.rsqrt(var + eps) * g_ref[...] + b_ref[...]


# ------------------- fused LayerNorm + matmul + bias (QKV projection) -------------

def _ln_matmul_kernel(x_ref, g_ref, b_ref, w_ref, bias_ref, o_ref, y_sc, *, eps):
    # LN is computed once per row tile (j == 0) and reused for every N tile.
    @pl.when(pl.program_id(1) == 0)
    def _ln():
        y_sc[...] = _layernorm_f32(x_ref, g_ref, b_ref, eps).astype(y_sc.dtype)

    acc = jnp.dot(y_sc[...], w_ref[...], preferred_element_type=jnp.float32)
    o_ref[...] = (acc + bias_ref[...]).astype(o_ref.dtype)


def ln_matmul_bias(x, g, b, w, bias):
    """LayerNorm(x) @ w + bias.  x:(M,K) bf16, w:(K,N) bf16 -> (M,N) bf16."""
    M, K = x.shape
    N = w.shape[1]
    tm = _pick_tile(M, _CFG["tm"], 16)
    tn = _pick_tile(N, _CFG["tn"], 128)
    return pl.pallas_call(
        functools.partial(_ln_matmul_kernel, eps=_LN_EPS),
        out_shape=jax.ShapeDtypeStruct((M, N), jnp.bfloat16),
        grid=(M // tm, N // tn),
        in_specs=[
            pl.BlockSpec((tm, K), lambda i, j: (i, 0)),   # LN needs the full K row
            pl.BlockSpec((1, K), lambda i, j: (0, 0)),
            pl.BlockSpec((1, K), lambda i, j: (0, 0)),
            pl.BlockSpec((K, tn), lambda i, j: (0, j)),
            pl.BlockSpec((1, tn), lambda i, j: (0, j)),
        ],
        out_specs=pl.BlockSpec((tm, tn), lambda i, j: (i, j)),
        scratch_shapes=[pltpu.VMEM((tm, K), jnp.bfloat16)],
        compiler_params=pltpu.CompilerParams(
            dimension_semantics=("parallel", "arbitrary"),   # j reuses the LN scratch
            vmem_limit_bytes=_CFG["vmem_limit"]),
    )(x, g.reshape(1, K), b.reshape(1, K), w, bias.reshape(1, N))


# --------------- K-tiled matmul + bias + fused residual add (attn out proj) -------

def _matmul_res_kernel(x_ref, w_ref, bias_ref, res_ref, o_ref, acc_ref):
    @pl.when(pl.program_id(2) == 0)
    def _init():
        acc_ref[...] = jnp.zeros_like(acc_ref)

    acc_ref[...] += jnp.dot(x_ref[...], w_ref[...], preferred_element_type=jnp.float32)

    @pl.when(pl.program_id(2) == pl.num_programs(2) - 1)
    def _done():
        o_ref[...] = (acc_ref[...] + bias_ref[...]
                      + res_ref[...].astype(jnp.float32)).astype(o_ref.dtype)


def matmul_bias_residual(x, w, bias, res):
    """res + (x @ w + bias).  bf16 in/out, f32 accumulation."""
    M, K = x.shape
    N = w.shape[1]
    tm = _pick_tile(M, _CFG["tm"], 16)
    tn = _pick_tile(N, _CFG["tn"], 128)
    tk = _pick_tile(K, _CFG["tk"], 128)
    return pl.pallas_call(
        _matmul_res_kernel,
        out_shape=jax.ShapeDtypeStruct((M, N), jnp.bfloat16),
        grid=(M // tm, N // tn, K // tk),
        in_specs=[
            pl.BlockSpec((tm, tk), lambda i, j, k: (i, k)),
            pl.BlockSpec((tk, tn), lambda i, j, k: (k, j)),
            pl.BlockSpec((1, tn), lambda i, j, k: (0, j)),
            pl.BlockSpec((tm, tn), lambda i, j, k: (i, j)),
        ],
        out_specs=pl.BlockSpec((tm, tn), lambda i, j, k: (i, j)),
        scratch_shapes=[pltpu.VMEM((tm, tn), jnp.float32)],
        compiler_params=pltpu.CompilerParams(
            dimension_semantics=("parallel", "parallel", "arbitrary"),
            vmem_limit_bytes=_CFG["vmem_limit"]),
    )(x, w, bias.reshape(1, N), res)


# ------------- fused MLP block: LN -> W1 -> GELU -> W2 (+bias) + residual ---------

def _mlp_kernel(x_ref, g_ref, b_ref, w1_ref, b1_ref, w2_ref, b2_ref, o_ref,
                y_sc, acc_sc, *, eps):
    j = pl.program_id(1)

    @pl.when(j == 0)
    def _init():
        y_sc[...] = _layernorm_f32(x_ref, g_ref, b_ref, eps).astype(y_sc.dtype)
        acc_sc[...] = jnp.zeros_like(acc_sc)

    hid = jnp.dot(y_sc[...], w1_ref[...], preferred_element_type=jnp.float32)
    hid = jax.nn.gelu(hid + b1_ref[...], approximate=True)          # GPT-2 "gelu_new"
    acc_sc[...] += jnp.dot(hid.astype(jnp.bfloat16), w2_ref[...],
                           preferred_element_type=jnp.float32)

    @pl.when(j == pl.num_programs(1) - 1)
    def _done():
        o_ref[...] = (acc_sc[...] + b2_ref[...]
                      + x_ref[...].astype(jnp.float32)).astype(o_ref.dtype)


def mlp_block(x, g, b, w1, b1, w2, b2):
    """x + MLP(LN(x)); the (M, d_ff) hidden stays in VMEM (never hits HBM)."""
    M, D = x.shape
    F = w1.shape[1]
    tm = _pick_tile(M, _CFG["tm"], 16)
    tf = _pick_tile(F, _CFG["tf"], 128)
    return pl.pallas_call(
        functools.partial(_mlp_kernel, eps=_LN_EPS),
        out_shape=jax.ShapeDtypeStruct((M, D), jnp.bfloat16),
        grid=(M // tm, F // tf),
        in_specs=[
            pl.BlockSpec((tm, D), lambda i, j: (i, 0)),
            pl.BlockSpec((1, D), lambda i, j: (0, 0)),
            pl.BlockSpec((1, D), lambda i, j: (0, 0)),
            pl.BlockSpec((D, tf), lambda i, j: (0, j)),
            pl.BlockSpec((1, tf), lambda i, j: (0, j)),
            pl.BlockSpec((tf, D), lambda i, j: (j, 0)),
            pl.BlockSpec((1, D), lambda i, j: (0, 0)),
        ],
        out_specs=pl.BlockSpec((tm, D), lambda i, j: (i, 0)),
        scratch_shapes=[pltpu.VMEM((tm, D), jnp.bfloat16),
                        pltpu.VMEM((tm, D), jnp.float32)],
        compiler_params=pltpu.CompilerParams(
            dimension_semantics=("parallel", "arbitrary"),
            vmem_limit_bytes=_CFG["vmem_limit"]),
    )(x, g.reshape(1, D), b.reshape(1, D), w1, b1.reshape(1, F), w2, b2.reshape(1, D))


# ------------------- flash-style causal self-attention (per-head) -----------------

def _flash_attn_kernel(qkv_ref, o_ref, m_sc, l_sc, acc_sc, *, n_head, d_model, tq, scale):
    # qkv_ref: (S, 3D) with columns [Q heads | K heads | V heads]; o_ref: (tq, D)
    qi = pl.program_id(1)
    Dh = d_model // n_head
    q_start = pl.multiple_of(qi * tq, tq)
    row = qi * tq + lax.broadcasted_iota(jnp.int32, (tq, tq), 0)

    for h in range(n_head):
        q_h = qkv_ref[pl.ds(q_start, tq), h * Dh:(h + 1) * Dh]        # (tq, Dh) bf16
        m_sc[...] = jnp.full_like(m_sc, _NEG_BIG)
        l_sc[...] = jnp.zeros_like(l_sc)
        acc_sc[...] = jnp.zeros_like(acc_sc)

        # Causal block skipping: only kv blocks 0..qi are visited.
        @pl.loop(0, qi + 1)
        def _kv_step(kvi):
            start = pl.multiple_of(kvi * tq, tq)
            k_h = qkv_ref[pl.ds(start, tq), d_model + h * Dh:d_model + (h + 1) * Dh]
            v_h = qkv_ref[pl.ds(start, tq), 2 * d_model + h * Dh:2 * d_model + (h + 1) * Dh]
            s = lax.dot_general(q_h, k_h, (((1,), (1,)), ((), ())),
                                preferred_element_type=jnp.float32) * scale
            col = kvi * tq + lax.broadcasted_iota(jnp.int32, (tq, tq), 1)
            s = jnp.where(col <= row, s, _NEG_BIG)                    # mask in f32
            m_prev = m_sc[...]
            m_new = jnp.maximum(m_prev, jnp.max(s, axis=-1, keepdims=True))
            alpha = jnp.exp(m_prev - m_new)
            p = jnp.exp(s - m_new)
            l_sc[...] = alpha * l_sc[...] + jnp.sum(p, axis=-1, keepdims=True)
            acc_sc[...] = alpha * acc_sc[...] + jnp.dot(
                p.astype(v_h.dtype), v_h, preferred_element_type=jnp.float32)
            m_sc[...] = m_new

        # Per-head store straight into the output slice (no concatenate).
        o_ref[:, h * Dh:(h + 1) * Dh] = (
            acc_sc[...] * pl.reciprocal(l_sc[...], approx=True)).astype(o_ref.dtype)


def causal_attention(qkv, n_head):
    """qkv: (B, S, 3*D) bf16 with [Q|K|V] head-major columns -> (B, S, D) bf16."""
    B, S, threeD = qkv.shape
    D = threeD // 3
    Dh = D // n_head
    tq = _pick_tile(S, 256, 16)
    kern = functools.partial(_flash_attn_kernel, n_head=n_head, d_model=D, tq=tq,
                             scale=1.0 / float(Dh) ** 0.5)
    # TODO(synk): for very long S (where the (S, 3D) kv slab no longer fits VMEM),
    # stream kv blocks with manual double-buffered DMA and add a head grid axis.
    return pl.pallas_call(
        kern,
        out_shape=jax.ShapeDtypeStruct((B, S, D), jnp.bfloat16),
        grid=(B, S // tq),
        in_specs=[pl.BlockSpec((None, S, threeD), lambda b, qi: (b, 0, 0))],
        out_specs=pl.BlockSpec((None, tq, D), lambda b, qi: (b, qi, 0)),
        scratch_shapes=[pltpu.VMEM((tq, 1), jnp.float32),
                        pltpu.VMEM((tq, 1), jnp.float32),
                        pltpu.VMEM((tq, Dh), jnp.float32)],
        compiler_params=pltpu.CompilerParams(
            dimension_semantics=("parallel", "parallel"),
            vmem_limit_bytes=_CFG["vmem_limit"]),
    )(qkv)


# ------------------ final LayerNorm + tied LM head (vocab-tiled) ------------------

def _lm_head_kernel(x_ref, g_ref, b_ref, wte_ref, o_ref, y_sc, *, eps):
    @pl.when(pl.program_id(1) == 0)
    def _ln():
        y_sc[...] = _layernorm_f32(x_ref, g_ref, b_ref, eps).astype(y_sc.dtype)

    # Contract wte in its natural (V, D) orientation (no transposed copy in HBM).
    o_ref[...] = lax.dot_general(
        y_sc[...], wte_ref[...], (((1,), (1,)), ((), ())),
        preferred_element_type=jnp.float32).astype(o_ref.dtype)


def lm_head(x, g, b, wte):
    """logits = LayerNorm(x) @ wte^T; vocab padded to a tile multiple, then sliced."""
    M, D = x.shape
    V = wte.shape[0]
    tm = _pick_tile(M, _CFG["tm"], 16)
    tv = min(_CFG["tn"], _round_up(V, 128))
    Vp = _round_up(V, tv)
    wte_p = wte if Vp == V else jnp.pad(wte, ((0, Vp - V), (0, 0)))
    logits = pl.pallas_call(
        functools.partial(_lm_head_kernel, eps=_LN_EPS),
        out_shape=jax.ShapeDtypeStruct((M, Vp), jnp.float32),
        grid=(M // tm, Vp // tv),
        in_specs=[
            pl.BlockSpec((tm, D), lambda i, j: (i, 0)),
            pl.BlockSpec((1, D), lambda i, j: (0, 0)),
            pl.BlockSpec((1, D), lambda i, j: (0, 0)),
            pl.BlockSpec((tv, D), lambda i, j: (j, 0)),
        ],
        out_specs=pl.BlockSpec((tm, tv), lambda i, j: (i, j)),
        scratch_shapes=[pltpu.VMEM((tm, D), jnp.bfloat16)],
        compiler_params=pltpu.CompilerParams(
            dimension_semantics=("parallel", "arbitrary"),
            vmem_limit_bytes=_CFG["vmem_limit"]),
    )(x, g.reshape(1, D), b.reshape(1, D), wte_p)
    return logits if Vp == V else logits[:, :V]


# ----- fused final-LN + tied LM head + shifted cross-entropy (no logits in HBM) ----

def _ln_head_ce_kernel(x_ref, g_ref, b_ref, wte_ref, lab_ref, o_ref,
                       y_sc, m_sc, l_sc, t_sc, *, eps, vocab):
    j = pl.program_id(1)
    tv = wte_ref.shape[0]

    @pl.when(j == 0)
    def _init():
        y_sc[...] = _layernorm_f32(x_ref, g_ref, b_ref, eps).astype(y_sc.dtype)
        m_sc[...] = jnp.full_like(m_sc, _NEG_BIG)
        l_sc[...] = jnp.zeros_like(l_sc)
        t_sc[...] = jnp.zeros_like(t_sc)

    logits = lax.dot_general(y_sc[...], wte_ref[...], (((1,), (1,)), ((), ())),
                             preferred_element_type=jnp.float32)        # (tm, tv)
    lab = lab_ref[...]                                                   # (tm, 1) int32
    col = j * tv + lax.broadcasted_iota(jnp.int32, logits.shape, 1)
    logits = jnp.where(col < vocab, logits, _NEG_BIG)     # mask padded vocab columns

    # target logit (labels < 0 never match -> ignored rows keep t = 0)
    t_sc[...] += jnp.sum(jnp.where(col == lab, logits, 0.0), axis=-1, keepdims=True)

    # online logsumexp across vocab tiles
    m_prev = m_sc[...]
    m_new = jnp.maximum(m_prev, jnp.max(logits, axis=-1, keepdims=True))
    l_sc[...] = (l_sc[...] * jnp.exp(m_prev - m_new)
                 + jnp.sum(jnp.exp(logits - m_new), axis=-1, keepdims=True))
    m_sc[...] = m_new

    @pl.when(j == pl.num_programs(1) - 1)
    def _done():
        valid = (lab_ref[...] >= 0).astype(jnp.float32)
        # TODO(synk): emit a lane-dense loss slab instead of an (M, 1) column.
        o_ref[...] = (m_sc[...] + jnp.log(l_sc[...]) - t_sc[...]) * valid


def ln_head_ce(x, g, b, wte, labels):
    """Per-token NLL of LayerNorm(x) @ wte^T vs int labels; labels < 0 -> loss 0."""
    M, D = x.shape
    V = wte.shape[0]
    tm = _pick_tile(M, _CFG["tm"], 16)
    tv = min(_CFG["tv"], _round_up(V, 128))
    Vp = _round_up(V, tv)
    wte_p = wte if Vp == V else jnp.pad(wte, ((0, Vp - V), (0, 0)))
    return pl.pallas_call(
        functools.partial(_ln_head_ce_kernel, eps=_LN_EPS, vocab=V),
        out_shape=jax.ShapeDtypeStruct((M, 1), jnp.float32),
        grid=(M // tm, Vp // tv),
        in_specs=[
            pl.BlockSpec((tm, D), lambda i, j: (i, 0)),
            pl.BlockSpec((1, D), lambda i, j: (0, 0)),
            pl.BlockSpec((1, D), lambda i, j: (0, 0)),
            pl.BlockSpec((tv, D), lambda i, j: (j, 0)),
            pl.BlockSpec((tm, 1), lambda i, j: (i, 0)),
        ],
        out_specs=pl.BlockSpec((tm, 1), lambda i, j: (i, 0)),
        scratch_shapes=[pltpu.VMEM((tm, D), jnp.bfloat16),
                        pltpu.VMEM((tm, 1), jnp.float32),
                        pltpu.VMEM((tm, 1), jnp.float32),
                        pltpu.VMEM((tm, 1), jnp.float32)],
        compiler_params=pltpu.CompilerParams(
            dimension_semantics=("parallel", "arbitrary"),
            vmem_limit_bytes=_CFG["vmem_limit"]),
    )(x, g.reshape(1, D), b.reshape(1, D), wte_p,
      labels.reshape(M, 1).astype(jnp.int32))


# --------------------------- model (plain-JAX glue) --------------------------------

def init_params(key, vocab, d_model, n_layer, d_ff, max_pos):
    def w_init(k, shape, scale=0.02):
        return (scale * jax.random.normal(k, shape, jnp.float32)).astype(jnp.bfloat16)

    keys = jax.random.split(key, 2 + n_layer)
    params = {
        "wte": w_init(keys[0], (vocab, d_model)),
        "wpe": w_init(keys[1], (max_pos, d_model), 0.01),
        "ln_f_g": jnp.ones((d_model,), jnp.float32),
        "ln_f_b": jnp.zeros((d_model,), jnp.float32),
        "layers": [],
    }
    for l in range(n_layer):
        k = jax.random.split(keys[2 + l], 4)
        params["layers"].append(dict(
            ln1_g=jnp.ones((d_model,), jnp.float32),
            ln1_b=jnp.zeros((d_model,), jnp.float32),
            wqkv=w_init(k[0], (d_model, 3 * d_model)),
            bqkv=jnp.zeros((3 * d_model,), jnp.float32),
            wo=w_init(k[1], (d_model, d_model)),
            bo=jnp.zeros((d_model,), jnp.float32),
            ln2_g=jnp.ones((d_model,), jnp.float32),
            ln2_b=jnp.zeros((d_model,), jnp.float32),
            w1=w_init(k[2], (d_model, d_ff)),
            b1=jnp.zeros((d_ff,), jnp.float32),
            w2=w_init(k[3], (d_ff, d_model)),
            b2=jnp.zeros((d_model,), jnp.float32),
        ))
    return params


def _trunk(params, input_ids, n_head):
    """Embeddings + transformer blocks; returns the bf16 (B*S, D) residual stream."""
    B, S = input_ids.shape
    V, D = params["wte"].shape
    # glue: embedding gather + position embeddings
    h = (params["wte"][input_ids] + params["wpe"][:S][None, :, :]).astype(jnp.bfloat16)
    h2d = h.reshape(B * S, D)
    for lyr in params["layers"]:
        qkv = ln_matmul_bias(h2d, lyr["ln1_g"], lyr["ln1_b"], lyr["wqkv"], lyr["bqkv"])
        attn = causal_attention(qkv.reshape(B, S, 3 * D), n_head)          # (B, S, D)
        h2d = matmul_bias_residual(attn.reshape(B * S, D), lyr["wo"], lyr["bo"], h2d)
        h2d = mlp_block(h2d, lyr["ln2_g"], lyr["ln2_b"],
                        lyr["w1"], lyr["b1"], lyr["w2"], lyr["b2"])
    return h2d


def generator_forward(params, input_ids, n_head):
    """GeneratorModel.forward == causal LM forward: returns logits (B, S, V)."""
    B, S = input_ids.shape
    V, D = params["wte"].shape
    h2d = _trunk(params, input_ids, n_head)
    logits = lm_head(h2d, params["ln_f_g"], params["ln_f_b"], params["wte"])
    return logits.reshape(B, S, V)


def compute_loss(params, input_ids, labels, n_head):
    """GeneratorModel.compute_loss: shifted CE, per-sequence mean -> (B,).

    The (B, S, V) logits never touch HBM: final-LN + tied head + CE are fused.
    """
    B, S = input_ids.shape
    h2d = _trunk(params, input_ids, n_head)
    # position s predicts labels[s+1]; the last position gets label -1 and is
    # ignored (zero loss), which also matches PyTorch's ignore_index (<0).
    shift_labels = jnp.concatenate(
        [labels[:, 1:].astype(jnp.int32), jnp.full((B, 1), -1, jnp.int32)], axis=1)
    nll = ln_head_ce(h2d, params["ln_f_g"], params["ln_f_b"], params["wte"],
                     shift_labels.reshape(B * S))                          # (B*S, 1)
    # glue: tiny per-sequence mean over the S-1 predicted positions
    return nll.reshape(B, S).sum(axis=-1) / jnp.float32(S - 1)


# ---------------------------------- main -------------------------------------------

if __name__ == "__main__":
    # small, deterministic GPT-2-style config
    VOCAB, D_MODEL, N_LAYER, N_HEAD, D_FF, MAX_POS = 128, 64, 2, 2, 256, 16
    B, S = 2, 8

    key = jax.random.PRNGKey(0)
    k_params, k_ids = jax.random.split(key)
    params = init_params(k_params, VOCAB, D_MODEL, N_LAYER, D_FF, MAX_POS)
    input_ids = jax.random.randint(k_ids, (B, S), 0, VOCAB, dtype=jnp.int32)
    labels = input_ids  # standard causal-LM labels

    logits = generator_forward(params, input_ids, N_HEAD)
    loss = compute_loss(params, input_ids, labels, N_HEAD)
    jax.block_until_ready((logits, loss))

    assert logits.shape == (B, S, VOCAB)
    assert loss.shape == (B,)
    assert bool(jnp.all(jnp.isfinite(logits)))
    assert bool(jnp.all(jnp.isfinite(loss)))
    print("KERNEL_OK")
</pallas_src>

<mosaic_0001>
module attributes {stable_mosaic.version = 11 : i64} {
  func.func @_ln_matmul_kernel(%arg0: i32, %arg1: i32, %arg2: memref<16x64xbf16, #tpu.memory_space<vmem>>, %arg3: memref<1x64xf32, #tpu.memory_space<vmem>>, %arg4: memref<1x64xf32, #tpu.memory_space<vmem>>, %arg5: memref<64x192xbf16, #tpu.memory_space<vmem>>, %arg6: memref<1x192xf32, #tpu.memory_space<vmem>>, %arg7: memref<16x192xbf16, #tpu.memory_space<vmem>>, %arg8: memref<16x64xbf16, #tpu.memory_space<vmem>>) attributes {dimension_semantics = [#tpu.dimension_semantics<parallel>, #tpu.dimension_semantics<arbitrary>], iteration_bounds = array<i64: 1, 1>, scalar_prefetch = 0 : i64, scratch_operands = 1 : i64, tpu.core_type = #tpu.core_type<tc>, window_params = [{transform_indices = @transform_0, window_bounds = array<i64: 16, 64>}, {pipeline_mode = #tpu.pipeline_mode<synchronous>, transform_indices = @transform_1, window_bounds = array<i64: 1, 64>}, {pipeline_mode = #tpu.pipeline_mode<synchronous>, transform_indices = @transform_2, window_bounds = array<i64: 1, 64>}, {transform_indices = @transform_3, window_bounds = array<i64: 64, 192>}, {transform_indices = @transform_4, window_bounds = array<i64: 1, 192>}, {transform_indices = @transform_5, window_bounds = array<i64: 16, 192>}]} {
    %c0_i32 = arith.constant 0 : i32
    %0 = arith.cmpi eq, %arg1, %c0_i32 : i32
    %1 = arith.extui %0 : i1 to i32
    %c0_i32_0 = arith.constant 0 : i32
    %2 = arith.cmpi ne, %1, %c0_i32_0 : i32
    scf.if %2 {
      %c0_8 = arith.constant 0 : index
      %c0_9 = arith.constant 0 : index
      %11 = vector.load %arg2[%c0_8, %c0_9] : memref<16x64xbf16, #tpu.memory_space<vmem>>, vector<16x64xbf16>
      %12 = arith.extf %11 : vector<16x64xbf16> to vector<16x64xf32>
      %cst_10 = arith.constant dense<0.000000e+00> : vector<16xf32>
      %13 = vector.multi_reduction <add>, %12, %cst_10 [1] : vector<16x64xf32> to vector<16xf32>
      %14 = vector.shape_cast %13 : vector<16xf32> to vector<16x1xf32>
      %cst_11 = arith.constant 6.400000e+01 : f32
      %15 = vector.broadcast %cst_11 : f32 to vector<16x1xf32>
      %16 = arith.divf %14, %15 : vector<16x1xf32>
      %17 = vector.broadcast %16 : vector<16x1xf32> to vector<16x64xf32>
      %18 = arith.subf %12, %17 : vector<16x64xf32>
      %19 = arith.mulf %18, %18 : vector<16x64xf32>
      %cst_12 = arith.constant dense<0.000000e+00> : vector<16xf32>
      %20 = vector.multi_reduction <add>, %19, %cst_12 [1] : vector<16x64xf32> to vector<16xf32>
      %21 = vector.shape_cast %20 : vector<16xf32> to vector<16x1xf32>
      %cst_13 = arith.constant 6.400000e+01 : f32
      %22 = vector.broadcast %cst_13 : f32 to vector<16x1xf32>
      %23 = arith.divf %21, %22 : vector<16x1xf32>
      %24 = vector.broadcast %16 : vector<16x1xf32> to vector<16x64xf32>
      %25 = arith.subf %12, %24 : vector<16x64xf32>
      %cst_14 = arith.constant 9.99999974E-6 : f32
      %26 = vector.broadcast %cst_14 : f32 to vector<16x1xf32>
      %27 = arith.addf %23, %26 : vector<16x1xf32>
      %28 = math.rsqrt %27 : vector<16x1xf32>
      %29 = vector.broadcast %28 : vector<16x1xf32> to vector<16x64xf32>
      %30 = arith.mulf %25, %29 : vector<16x64xf32>
      %c0_15 = arith.constant 0 : index
      %c0_16 = arith.constant 0 : index
      %31 = vector.load %arg3[%c0_15, %c0_16] : memref<1x64xf32, #tpu.memory_space<vmem>>, vector<1x64xf32>
      %32 = vector.broadcast %31 : vector<1x64xf32> to vector<16x64xf32>
      %33 = arith.mulf %30, %32 : vector<16x64xf32>
      %c0_17 = arith.constant 0 : index
      %c0_18 = arith.constant 0 : index
      %34 = vector.load %arg4[%c0_17, %c0_18] : memref<1x64xf32, #tpu.memory_space<vmem>>, vector<1x64xf32>
      %35 = vector.broadcast %34 : vector<1x64xf32> to vector<16x64xf32>
      %36 = arith.addf %33, %35 : vector<16x64xf32>
      %37 = arith.truncf %36 : vector<16x64xf32> to vector<16x64xbf16>
      %c0_19 = arith.constant 0 : index
      %c0_20 = arith.constant 0 : index
      %38 = vector.load %arg8[%c0_19, %c0_20] : memref<16x64xbf16, #tpu.memory_space<vmem>>, vector<16x64xbf16>
      tpu.vector_store %arg8[%c0_19, %c0_20], %37 {strides = array<i32>} : memref<16x64xbf16, #tpu.memory_space<vmem>>, vector<16x64xbf16>,
    } else {
    }
    %c0 = arith.constant 0 : index
    %c0_1 = arith.constant 0 : index
    %3 = vector.load %arg8[%c0, %c0_1] : memref<16x64xbf16, #tpu.memory_space<vmem>>, vector<16x64xbf16>
    %c0_2 = arith.constant 0 : index
    %c0_3 = arith.constant 0 : index
    %4 = vector.load %arg5[%c0_2, %c0_3] : memref<64x192xbf16, #tpu.memory_space<vmem>>, vector<64x192xbf16>
    %cst = arith.constant dense<0.000000e+00> : vector<16x192xf32>
    %5 = tpu.matmul %3, %4, %cst {dimension_numbers = #tpu.dot_dimension_numbers<[1], [0], [0], [1], [0, 0, 1, 1], [], []>} : vector<16x64xbf16>, vector<64x192xbf16>, vector<16x192xf32> -> vector<16x192xf32>
    %c0_4 = arith.constant 0 : index
    %c0_5 = arith.constant 0 : index
    %6 = vector.load %arg6[%c0_4, %c0_5] : memref<1x192xf32, #tpu.memory_space<vmem>>, vector<1x192xf32>
    %7 = vector.broadcast %6 : vector<1x192xf32> to vector<16x192xf32>
    %8 = arith.addf %5, %7 : vector<16x192xf32>
    %9 = arith.truncf %8 : vector<16x192xf32> to vector<16x192xbf16>
    %c0_6 = arith.constant 0 : index
    %c0_7 = arith.constant 0 : index
    %10 = vector.load %arg7[%c0_6, %c0_7] : memref<16x192xbf16, #tpu.memory_space<vmem>>, vector<16x192xbf16>
    tpu.vector_store %arg7[%c0_6, %c0_7], %9 {strides = array<i32>} : memref<16x192xbf16, #tpu.memory_space<vmem>>, vector<16x192xbf16>,
    return
  }
  func.func @transform_0(%arg0: i32, %arg1: i32) -> (i32, i32) {
    %c0_i32 = arith.constant 0 : i32
    %c0_i32_0 = arith.constant 0 : i32
    return %arg0, %c0_i32 : i32, i32
  }
  func.func @transform_1(%arg0: i32, %arg1: i32) -> (i32, i32) {
    %c0_i32 = arith.constant 0 : i32
    %c0_i32_0 = arith.constant 0 : i32
    %c0_i32_1 = arith.constant 0 : i32
    return %c0_i32, %c0_i32_0 : i32, i32
  }
  func.func @transform_2(%arg0: i32, %arg1: i32) -> (i32, i32) {
    %c0_i32 = arith.constant 0 : i32
    %c0_i32_0 = arith.constant 0 : i32
    %c0_i32_1 = arith.constant 0 : i32
    return %c0_i32, %c0_i32_0 : i32, i32
  }
  func.func @transform_3(%arg0: i32, %arg1: i32) -> (i32, i32) {
    %c0_i32 = arith.constant 0 : i32
    %c0_i32_0 = arith.constant 0 : i32
    return %c0_i32, %arg1 : i32, i32
  }
  func.func @transform_4(%arg0: i32, %arg1: i32) -> (i32, i32) {
    %c0_i32 = arith.constant 0 : i32
    %c0_i32_0 = arith.constant 0 : i32
    return %c0_i32, %arg1 : i32, i32
  }
  func.func @transform_5(%arg0: i32, %arg1: i32) -> (i32, i32) {
    %c0_i32 = arith.constant 0 : i32
    return %arg0, %arg1 : i32, i32
  }
}

</mosaic_0001>

<llo_original>
// kernel: tpu_custom_call.1
$region0: #{tpu_custom_call.1}
  #allocation0 [shape = 'u32[]', space=smem, size = 0x4, offset = 0x4, fixed_abs, tag = 'smem constant byte address 0x4 - core index']
  #allocation1 [shape = 'u32[144,128]{1,0:T(1,128)}', space=vmem, size = 0x12000, scoped, tag = 'internal scratch']
  #allocation2 [shape = 'bf16[16,64]{1,0:T(16,128)(2,1)}', space=vmem, size = 0x1000, scoped, tag = 'scratch operand']
  %s0 = inlined_call_operand.hbm [shape: bf16[16,64], index: 0, kind: input, shape index: {}]
  %s1 = inlined_call_operand.vmem [shape: f32[1,64], index: 1, kind: input, shape index: {}]
  %s2 = inlined_call_operand.vmem [shape: f32[1,64], index: 2, kind: input, shape index: {}]
  %s3 = inlined_call_operand.hbm [shape: bf16[64,192], index: 3, kind: input, shape index: {}]
  %s4 = inlined_call_operand.vmem [shape: f32[1,192], index: 4, kind: input, shape index: {}]
  %s5 = inlined_call_operand.hbm [shape: bf16[16,192], index: 5, kind: output, shape index: {}]
  %s6 = sld [smem:[#allocation0]]
  $region42: #{tpu_custom_call.1} parent=0
    _
  %s8 = ssub.s32 1, %s6
  %s9 = scalar_select 0, %s8, %s6
  $region1: #{tpu_custom_call.1} parent=0
    #allocation3 [shape = 'u8[4096]{0}', space=vmem, size = 0x1000, scoped, tag = 'input window, operand 0, single buffered']
    #allocation4 [shape = 's32[1]{0}', space=sflag, size = 0x4, scoped, tag = 'scoped memory for tpu_custom_call.1']
    #allocation5 [shape = 's32[1]{0}', space=sflag, size = 0x4, scoped, tag = 'scoped memory for tpu_custom_call.1']
    #allocation6 [shape = 'u8[32768]{0}', space=vmem, size = 0x8000, scoped, tag = 'input window, operand 3, single buffered']
    #allocation7 [shape = 's32[1]{0}', space=sflag, size = 0x4, scoped, tag = 'scoped memory for tpu_custom_call.1']
    #allocation8 [shape = 'u8[8192]{0}', space=vmem, size = 0x2000, scoped, tag = 'output window, operand 0, single buffered']
    %10 = vsyncpa [#allocation4], 0
    %11 = vsyncpa [#allocation7], 0
    %12 = vsyncpa [#allocation5], 0
    // Predicated region
    $region2: #{tpu_custom_call.1} parent=1 // pred_check
      _
    $region3: #{tpu_custom_call.1} parent=1 // pred_check_branch
      %14 = sbr.rel (0) target = $region5
    $region4: #{tpu_custom_call.1} parent=1 // pred_region
      %s16 = ssub.s32 128, 128
      %17 = vsyncadd [#allocation4], %s16
      %s18 = sshll.u32 [#allocation3], 4
      %s19 = int_to_ptr.vmem [resolvable:$true] %s18
      %24 = dma.hbm_to_vmem [thread:$0]  %s0, 128, %s19, [#allocation4], 64, 64, 4
    $region5: #{tpu_custom_call.1} parent=1 // pred_fallthru
      _
    // Predicated region
    $region6: #{tpu_custom_call.1} parent=1 // pred_check
      _
    $region7: #{tpu_custom_call.1} parent=1 // pred_check_branch
      %26 = sbr.rel (0) target = $region9
    $region8: #{tpu_custom_call.1} parent=1 // pred_region
      _
    $region9: #{tpu_custom_call.1} parent=1 // pred_fallthru
      _
    // Predicated region
    $region10: #{tpu_custom_call.1} parent=1 // pred_check
      _
    $region11: #{tpu_custom_call.1} parent=1 // pred_check_branch
      %28 = sbr.rel (0) target = $region13
    $region12: #{tpu_custom_call.1} parent=1 // pred_region
      _
    $region13: #{tpu_custom_call.1} parent=1 // pred_fallthru
      _
    // Predicated region
    $region14: #{tpu_custom_call.1} parent=1 // pred_check
      _
    $region15: #{tpu_custom_call.1} parent=1 // pred_check_branch
      %30 = sbr.rel (0) target = $region17
    $region16: #{tpu_custom_call.1} parent=1 // pred_region
      %s32 = ssub.s32 1024, 1024
      %33 = vsyncadd [#allocation7], %s32
      %s34 = sshll.u32 [#allocation6], 4
      %s35 = int_to_ptr.vmem [resolvable:$true] %s34
      %40 = dma.hbm_to_vmem [thread:$0]  %s3, 1024, %s35, [#allocation7], 128, 128, 8
    $region17: #{tpu_custom_call.1} parent=1 // pred_fallthru
      _
    // Predicated region
    $region18: #{tpu_custom_call.1} parent=1 // pred_check
      _
    $region19: #{tpu_custom_call.1} parent=1 // pred_check_branch
      %42 = sbr.rel (0) target = $region21
    $region20: #{tpu_custom_call.1} parent=1 // pred_region
      _
    $region21: #{tpu_custom_call.1} parent=1 // pred_fallthru
      _
    // Predicated region
    $region22: #{tpu_custom_call.1} parent=1 // pred_check
      _
    $region23: #{tpu_custom_call.1} parent=1 // pred_check_branch
      %44 = sbr.rel (0) target = $region25
    $region24: #{tpu_custom_call.1} parent=1 // pred_region
      %45 = dma.done [#allocation4], 128
    $region25: #{tpu_custom_call.1} parent=1 // pred_fallthru
      _
    // Predicated region
    $region26: #{tpu_custom_call.1} parent=1 // pred_check
      _
    $region27: #{tpu_custom_call.1} parent=1 // pred_check_branch
      %47 = sbr.rel (0) target = $region29
    $region28: #{tpu_custom_call.1} parent=1 // pred_region
      %48 = dma.done [#allocation7], 1024
    $region29: #{tpu_custom_call.1} parent=1 // pred_fallthru
      _
    %p50 = scmp.eq.s32.totalorder 0, 0
    // Predicated region
    $region30: #{tpu_custom_call.1} parent=1 // pred_check
      %p51 = pneg %p50
    $region31: #{tpu_custom_call.1} parent=1 // pred_check_branch
      %53 = sbr.rel (%p51) target = $region33
    $region32: #{tpu_custom_call.1} parent=1 // pred_region
      %v54 = vld [vmem:[#allocation3] sm:$0xf]
      %v55 = vld [vmem:[#allocation3 + $0x4] sm:$0xf]
      %v56 = vunpack.c.l.bf16 %v54
      %v57 = vunpack.c.l.bf16 %v55
      %vm58 = vcmask 523264
      %v59 = vsel %vm58, %v56, 0.0
      %60 = vadd.xlane.f32.xlu0 %v59
      %v61 = vpop.xlane.xlu0 %60
      %v62 = vsel %vm58, %v57, 0.0
      %63 = vadd.xlane.f32.xlu0 %v62
      %v64 = vpop.xlane.xlu0 %63
      %v65 = vrcp.pop 64.0
      %v66 = vmul.f32 %v61, %v65
      %v67 = vmul.f32 %v64, %v65
      %v68 = vsub.f32 %v56, %v66
      %v69 = vsub.f32 %v57, %v67
      %v70 = vmul.f32 %v68, %v68
      %v71 = vmul.f32 %v69, %v69
      %v72 = vsel %vm58, %v70, 0.0
      %73 = vadd.xlane.f32.xlu0 %v72
      %v74 = vpop.xlane.xlu0 %73
      %v75 = vsel %vm58, %v71, 0.0
      %76 = vadd.xlane.f32.xlu0 %v75
      %v77 = vpop.xlane.xlu0 %76
      %v78 = vmul.f32 %v74, %v65
      %v79 = vmul.f32 %v77, %v65
      %v80 = vadd.f32 %v78, 1e-05
      %v81 = vadd.f32 %v79, 1e-05
      %v82 = vrsqrt.pop %v80
      %v83 = vrsqrt.pop %v81
      %v84 = vmul.f32 %v68, %v82
      %v85 = vmul.f32 %v69, %v83
      %v86 = vld [vmem:[%s1] sm:$0x1]
      %v88 = vlaneseq
      %v89 = vshrl.u32 %v88, 7
      %v90 = vsub.s32 0, %v89
      %v91 = vrot.slane %v86, %v90
      %v93 = vmul.f32 %v84, %v91
      %v94 = vmul.f32 %v85, %v91
      %v95 = vld [vmem:[%s2] sm:$0x1]
      %v97 = vlaneseq
      %v98 = vshrl.u32 %v97, 7
      %v99 = vsub.s32 0, %v98
      %v100 = vrot.slane %v95, %v99
      %v102 = vadd.f32 %v93, %v100
      %v103 = vadd.f32 %v94, %v100
      %v104 = vpack.c.bf16 %v103, %v102
      %105 = vst.msk [vmem:[#allocation2] sm:$0xff] %vm58, %v104
    $region33: #{tpu_custom_call.1} parent=1 // pred_fallthru
      _
    %v106 = vld [vmem:[#allocation2] sm:$0xff]
    %v107 = vld [vmem:[#allocation6] sm:$0xff]
    %v108 = vld [vmem:[#allocation6 + $0x8] sm:$0xff]
    %v109 = vld [vmem:[#allocation6 + $0x10] sm:$0xff]
    %v110 = vld [vmem:[#allocation6 + $0x18] sm:$0xff]
    %v111 = vld [vmem:[#allocation6 + $0x20] sm:$0xff]
    %v112 = vld [vmem:[#allocation6 + $0x28] sm:$0xff]
    %v113 = vld [vmem:[#allocation6 + $0x30] sm:$0xff]
    %v114 = vld [vmem:[#allocation6 + $0x38] sm:$0xff]
    %v115 = vld [vmem:[%s4] sm:$0x3]
    %v117 = vlaneseq
    %v118 = vshrl.u32 %v117, 7
    %v119 = vsub.s32 0, %v118
    %v120 = vrot.slane %v115, %v119
    %v121 = vlaneseq
    %v122 = vshrl.u32 %v121, 7
    %v123 = vsub.s32 1, %v122
    %v124 = vrot.slane %v115, %v123
    %v135 = vunpack.c.l.b16 %v107
    %v136 = vunpack.c.h.b16 %v107
    %v137 = vunpack.c.l.b16 %v108
    %v138 = vunpack.c.h.b16 %v108
    %v139 = vunpack.c.l.b16 %v109
    %v140 = vunpack.c.h.b16 %v109
    %v141 = vunpack.c.l.b16 %v110
    %v142 = vunpack.c.h.b16 %v110
    %v143 = vunpack.c.l.b16 %v111
    %v144 = vunpack.c.h.b16 %v111
    %v145 = vunpack.c.l.b16 %v112
    %v146 = vunpack.c.h.b16 %v112
    %v147 = vunpack.c.l.b16 %v113
    %v148 = vunpack.c.h.b16 %v113
    %v149 = vunpack.c.l.b16 %v114
    %v150 = vunpack.c.h.b16 %v114
    %v151 = vpack.c.b16 %v137, %v135
    %v152 = vpack.c.b16 %v138, %v136
    %v153 = vpack.c.b16 %v141, %v139
    %v154 = vpack.c.b16 %v142, %v140
    %v155 = vpack.c.b16 %v145, %v143
    %v156 = vpack.c.b16 %v146, %v144
    %v157 = vpack.c.b16 %v149, %v147
    %v158 = vpack.c.b16 %v150, %v148
    %vm167 = vcmask 523264
    %v169 = vsel %vm167, %v106, 0
    %171 = vmatprep.subr.bf16.mxu0 %v152
    %172 = vmatpush1.bf16.msra.mxu0 %v151
    %173 = vmatprep.subr.bf16.mxu0 %v154
    %174 = vmatpush1.bf16.msra.mxu0 %v153
    %175 = vmatprep.subr.bf16.mxu0 %v156
    %176 = vmatpush1.bf16.msra.mxu0 %v155
    %177 = vmatprep.subr.bf16.mxu0 %v158
    %178 = vmatpush1.bf16.msra.mxu0 %v157
    %179 = vmatprep.subr.bf16.mxu0 0
    %180 = vmatpush1.bf16.msra.mxu0 0
    %181 = vmatprep.subr.bf16.mxu0 0
    %182 = vmatpush1.bf16.msra.mxu0 0
    %183 = vmatprep.subr.bf16.mxu0 0
    %184 = vmatpush1.bf16.msra.mxu0 0
    %185 = vmatprep.subr.bf16.mxu0 0
    %186 = vmatpush1.bf16.msra.mxu0 0
    %187 = vmatprep.subr.bf16.mxu0 0
    %188 = vmatpush1.bf16.msra.mxu0 0
    %189 = vmatprep.subr.bf16.mxu0 0
    %190 = vmatpush1.bf16.msra.mxu0 0
    %191 = vmatprep.subr.bf16.mxu0 0
    %192 = vmatpush1.bf16.msra.mxu0 0
    %193 = vmatprep.subr.bf16.mxu0 0
    %194 = vmatpush1.bf16.msra.mxu0 0
    %195 = vmatprep.subr.bf16.mxu0 0
    %196 = vmatpush1.bf16.msra.mxu0 0
    %197 = vmatprep.subr.bf16.mxu0 0
    %198 = vmatpush1.bf16.msra.mxu0 0
    %199 = vmatprep.subr.bf16.mxu0 0
    %200 = vmatpush1.bf16.msra.mxu0 0
    %201 = vmatprep.subr.bf16.mxu0 0
    %202 = vmatpush1.bf16.msra.mxu0 0
    %203 = vmatprep.mubr.bf16.mxu0 0
    %204 = vmatmul.mubr.bf16.gmra.mrb[0].mxu0 %v169
    %v205 = vpop.f32.mrb[0].mxu0
    %v206 = vadd.f32 %v120, %v205
    %v207 = vpop.f32.mrb[0].mxu0
    %v208 = vadd.f32 %v124, %v207
    %v209 = vpop.f32.mrb[0].mxu0
    %v210 = vadd.f32 %v120, %v209
    %v211 = vpop.f32.mrb[0].mxu0
    %v212 = vadd.f32 %v124, %v211
    %213 = vdwg.mxu0
    %v214 = vpack.c.bf16 %v210, %v206
    %v215 = vpack.c.bf16 %v212, %v208
    %v218 = vunpack.c.l.b16 %v214
    %v219 = vunpack.c.l.b16 %v215
    %v220 = vunpack.c.h.b16 %v214
    %v221 = vunpack.c.h.b16 %v215
    %v222 = vpack.c.b16 %v219, %v218
    %v223 = vpack.c.b16 %v221, %v220
    %vm226 = vcmask 1043456
    %vm227 = vcmask 523268
    %vm228 = vmor %vm227, %vm226
    %229 = vst.msk [vmem:[#allocation8] sm:$0xff] %vm228, %v222
    %230 = vst.msk [vmem:[#allocation8 + $0x8] sm:$0xff] %vm228, %v223
    // Predicated region
    $region34: #{tpu_custom_call.1} parent=1 // pred_check
      _
    $region35: #{tpu_custom_call.1} parent=1 // pred_check_branch
      %232 = sbr.rel (0) target = $region37
    $region36: #{tpu_custom_call.1} parent=1 // pred_region
      %s234 = ssub.s32 256, 256
      %235 = vsyncadd [#allocation5], %s234
      %s236 = sshll.u32 [#allocation8], 4
      %s237 = int_to_ptr.vmem [resolvable:$true] %s236
      %242 = dma.vmem_to_hbm [thread:$0]  %s237, 256, %s5, [#allocation5], 128, 128, 8
    $region37: #{tpu_custom_call.1} parent=1 // pred_fallthru
      _
    // Predicated region
    $region38: #{tpu_custom_call.1} parent=1 // pred_check
      _
    $region39: #{tpu_custom_call.1} parent=1 // pred_check_branch
      %244 = sbr.rel (0) target = $region41
    $region40: #{tpu_custom_call.1} parent=1 // pred_region
      %245 = dma.done [#allocation5], 256
    $region41: #{tpu_custom_call.1} parent=1 // pred_fallthru
      _
    %246 = vsyncpa [#allocation4], 1
    %247 = vsyncpa [#allocation7], 1
    %248 = vsyncpa [#allocation5], 1

</llo_original>
